<compile_context>
chip_gen: v6e
topology: v6e:2x2x1
jax: 0.10.0
libtpu: 0.0.40
codegen_flags: <defaults>
</compile_context>

<pallas_src>
import functools

import jax
import jax.numpy as jnp
from jax.experimental import pallas as pl
from jax.experimental.pallas import tpu as pltpu


def _diag_plus_kernel(d_ref, o_ref, *, eps):
    """Writes one (T, T) output tile.

    d_ref : (1, T) slice of Z's diagonal for this tile's *row* block
            (only read on diagonal tiles).
    o_ref : (T, T) output tile.
    """
    i = pl.program_id(0)
    j = pl.program_id(1)
    shape = o_ref.shape  # (T, T)

    @pl.when(i == j)
    def _diag_tile():
        row = jax.lax.broadcasted_iota(jnp.int32, shape, 0)
        col = jax.lax.broadcasted_iota(jnp.int32, shape, 1)
        # d has shape (1, T): sublane-broadcast puts d[c] in every row of
        # column c; the row == col mask keeps exactly d[r] at (r, r).
        # On ragged edge tiles the OOB tail of d is garbage, but it is only
        # selected at (r, r) positions whose global index is >= n, which are
        # dropped on writeback.
        d = jnp.abs(d_ref[...]) + eps
        o_ref[...] = jnp.where(row == col, d, 0.0).astype(o_ref.dtype)

    @pl.when(i != j)
    def _zero_tile():
        # Off-diagonal tiles: pure lane-dense zero store, no input DMA, no
        # iota/compare/select work.
        o_ref[...] = jnp.zeros(shape, o_ref.dtype)


def diag_plus(Z, eps=0.01, *, tile=1024):
    """Z: [N, N] float array -> [N, N] float array.

    tile: square output tile edge (multiple of 128 recommended). 1024 is safe
    on v5e/v6e/v7x with the 48 MiB vmem limit below; on v7x a larger tile
    (e.g. 1536) further reduces per-step overhead if the limit is raised.
    """
    assert Z.ndim == 2 and Z.shape[0] == Z.shape[1], "Z must be square"
    n = Z.shape[0]

    # Only the diagonal of Z is ever needed -> cheap XLA gather outside the
    # kernel; the kernel then reads N elements instead of N^2.
    d = jnp.diagonal(Z).reshape(1, n)

    # Small matrices: a single full-extent block (always layout-legal).
    # Large matrices: fixed big tile + cdiv grid (ragged edges handled by
    # Pallas dropping OOB writes) -> no divisor hunting, no T=128 slow path,
    # no VMEM-busting (n, n) fallback.
    t = n if n <= tile else tile
    grid = (pl.cdiv(n, t), pl.cdiv(n, t))  # column axis (j) innermost: the
    #                                        diag block index (0, i) is
    #                                        constant across it, so each diag
    #                                        slice is DMA'd once per tile row.

    itemsize = jnp.dtype(Z.dtype).itemsize
    kernel = functools.partial(_diag_plus_kernel, eps=eps)
    return pl.pallas_call(
        kernel,
        out_shape=jax.ShapeDtypeStruct((n, n), Z.dtype),
        grid_spec=pl.GridSpec(
            grid=grid,
            in_specs=[pl.BlockSpec((1, t), lambda i, j: (0, i))],
            out_specs=pl.BlockSpec((t, t), lambda i, j: (i, j)),
        ),
        compiler_params=pltpu.CompilerParams(
            dimension_semantics=("parallel", "parallel"),
            # Above v5e's 16 MiB scoped default (needed for the 1024 tile +
            # elementwise temporaries), comfortably under v7x's 64 MiB
            # physical VMEM per TensorCore.
            vmem_limit_bytes=48 * 1024 * 1024,
        ),
        # Pure-bandwidth op: n^2 elements written, n read. Helps XLA schedule
        # overlap when embedded in the larger GP pipeline.
        cost_estimate=pl.CostEstimate(
            flops=0,
            transcendentals=0,
            bytes_accessed=n * n * itemsize + n * itemsize,
        ),
    )(d)


def _ref(Z, eps=0.01):
    n = Z.shape[0]
    return jnp.diag(jnp.abs(jnp.diag(Z))) + eps * jnp.eye(n, dtype=Z.dtype)


if __name__ == "__main__":
    key = jax.random.PRNGKey(0)

    # n=16:   typical GP use case; single full-extent block path.
    # n=640:  <= tile -> single (640, 640) block (previously the T=128 slow
    #         path); exercises a non-multiple-of-128 full-extent block.
    # n=1040: > tile -> 2x2 cdiv grid with ragged edge tiles on both axes;
    #         validates the dropped-OOB-write / garbage-d-tail edge handling.
    for idx, n in enumerate((16, 640, 1040)):
        Z = jax.random.normal(jax.random.fold_in(key, idx), (n, n),
                              dtype=jnp.float32)
        out = jax.block_until_ready(diag_plus(Z))
        assert out.shape == (n, n)
        assert jnp.allclose(out, _ref(Z), atol=1e-6), \
            f"mismatch vs reference (n={n})"

    print("KERNEL_OK")
</pallas_src>

<mosaic_0001>
module attributes {stable_mosaic.version = 11 : i64} {
  func.func @_diag_plus_kernel(%arg0: i32, %arg1: i32, %arg2: memref<1x16xf32, #tpu.memory_space<vmem>>, %arg3: memref<16x16xf32, #tpu.memory_space<vmem>>) attributes {dimension_semantics = [#tpu.dimension_semantics<parallel>, #tpu.dimension_semantics<parallel>], iteration_bounds = array<i64: 1, 1>, scalar_prefetch = 0 : i64, scratch_operands = 0 : i64, tpu.core_type = #tpu.core_type<tc>, window_params = [{transform_indices = @transform_0, window_bounds = array<i64: 1, 16>}, {transform_indices = @transform_1, window_bounds = array<i64: 16, 16>}]} {
    %0 = arith.cmpi eq, %arg0, %arg1 : i32
    %1 = arith.extui %0 : i1 to i32
    %c0_i32 = arith.constant 0 : i32
    %2 = arith.cmpi ne, %1, %c0_i32 : i32
    scf.if %2 {
      %6 = tpu.iota {dimensions = array<i32: 0>} : vector<16x16xi32>
      %7 = tpu.iota {dimensions = array<i32: 1>} : vector<16x16xi32>
      %c0 = arith.constant 0 : index
      %c0_1 = arith.constant 0 : index
      %8 = vector.load %arg2[%c0, %c0_1] : memref<1x16xf32, #tpu.memory_space<vmem>>, vector<1x16xf32>
      %9 = math.absf %8 : vector<1x16xf32>
      %cst = arith.constant 0.00999999977 : f32
      %10 = vector.broadcast %cst : f32 to vector<1x16xf32>
      %11 = arith.addf %9, %10 : vector<1x16xf32>
      %12 = arith.cmpi eq, %6, %7 : vector<16x16xi32>
      %cst_2 = arith.constant 0.000000e+00 : f32
      %13 = vector.shape_cast %11 : vector<1x16xf32> to vector<1x16xf32>
      %14 = vector.broadcast %13 : vector<1x16xf32> to vector<16x16xf32>
      %15 = vector.broadcast %cst_2 : f32 to vector<16x16xf32>
      %16 = arith.select %12, %14, %15 : vector<16x16xi1>, vector<16x16xf32>
      %c0_3 = arith.constant 0 : index
      %c0_4 = arith.constant 0 : index
      %17 = vector.load %arg3[%c0_3, %c0_4] : memref<16x16xf32, #tpu.memory_space<vmem>>, vector<16x16xf32>
      tpu.vector_store %arg3[%c0_3, %c0_4], %16 {strides = array<i32>} : memref<16x16xf32, #tpu.memory_space<vmem>>, vector<16x16xf32>,
    } else {
    }
    %3 = arith.cmpi ne, %arg0, %arg1 : i32
    %4 = arith.extui %3 : i1 to i32
    %c0_i32_0 = arith.constant 0 : i32
    %5 = arith.cmpi ne, %4, %c0_i32_0 : i32
    scf.if %5 {
      %cst = arith.constant 0.000000e+00 : f32
      %6 = vector.broadcast %cst : f32 to vector<16x16xf32>
      %c0 = arith.constant 0 : index
      %c0_1 = arith.constant 0 : index
      %7 = vector.load %arg3[%c0, %c0_1] : memref<16x16xf32, #tpu.memory_space<vmem>>, vector<16x16xf32>
      tpu.vector_store %arg3[%c0, %c0_1], %6 {strides = array<i32>} : memref<16x16xf32, #tpu.memory_space<vmem>>, vector<16x16xf32>,
    } else {
    }
    return
  }
  func.func @transform_0(%arg0: i32, %arg1: i32) -> (i32, i32) {
    %c0_i32 = arith.constant 0 : i32
    %c0_i32_0 = arith.constant 0 : i32
    return %c0_i32, %arg0 : i32, i32
  }
  func.func @transform_1(%arg0: i32, %arg1: i32) -> (i32, i32) {
    %c0_i32 = arith.constant 0 : i32
    return %arg0, %arg1 : i32, i32
  }
}

</mosaic_0001>

<llo_original>
// kernel: tpu_custom_call.1
$region0: #{tpu_custom_call.1}
  #allocation0 [shape = 'u32[]', space=smem, size = 0x4, offset = 0x4, fixed_abs, tag = 'smem constant byte address 0x4 - core index']
  #allocation1 [shape = 'u32[144,128]{1,0:T(1,128)}', space=vmem, size = 0x12000, scoped, tag = 'internal scratch']
  %s0 = inlined_call_operand.hbm [shape: f32[1,16], index: 0, kind: input, shape index: {}]
  %s1 = inlined_call_operand.hbm [shape: f32[16,16], index: 1, kind: output, shape index: {}]
  %s2 = sld [smem:[#allocation0]]
  $region26: #{tpu_custom_call.1} parent=0
    _
  %s4 = ssub.s32 1, %s2
  %s5 = scalar_select 0, %s4, %s2
  $region1: #{tpu_custom_call.1} parent=0
    #allocation2 [shape = 'u8[512]{0}', space=vmem, size = 0x400, scoped, tag = 'input window, operand 0, single buffered']
    #allocation3 [shape = 's32[1]{0}', space=sflag, size = 0x4, scoped, tag = 'scoped memory for tpu_custom_call.1']
    #allocation4 [shape = 's32[1]{0}', space=sflag, size = 0x4, scoped, tag = 'scoped memory for tpu_custom_call.1']
    #allocation5 [shape = 'u8[8192]{0}', space=vmem, size = 0x2000, scoped, tag = 'output window, operand 0, single buffered']
    %6 = vsyncpa [#allocation3], 0
    %7 = vsyncpa [#allocation4], 0
    // Predicated region
    $region2: #{tpu_custom_call.1} parent=1 // pred_check
      _
    $region3: #{tpu_custom_call.1} parent=1 // pred_check_branch
      %9 = sbr.rel (0) target = $region5
    $region4: #{tpu_custom_call.1} parent=1 // pred_region
      %s11 = ssub.s32 16, 16
      %12 = vsyncadd [#allocation3], %s11
      %s14 = sshll.u32 [#allocation2], 4
      %s15 = int_to_ptr.vmem [resolvable:$true] %s14
      %17 = dma.hbm_to_vmem [thread:$0]  %s0, 16, %s15, [#allocation3]
    $region5: #{tpu_custom_call.1} parent=1 // pred_fallthru
      _
    // Predicated region
    $region6: #{tpu_custom_call.1} parent=1 // pred_check
      _
    $region7: #{tpu_custom_call.1} parent=1 // pred_check_branch
      %19 = sbr.rel (0) target = $region9
    $region8: #{tpu_custom_call.1} parent=1 // pred_region
      %20 = dma.done [#allocation3], 16
    $region9: #{tpu_custom_call.1} parent=1 // pred_fallthru
      _
    %p21 = scmp.eq.s32.totalorder 0, 0
    // Predicated region
    $region10: #{tpu_custom_call.1} parent=1 // pred_check
      %p22 = pneg %p21
    $region11: #{tpu_custom_call.1} parent=1 // pred_check_branch
      %24 = sbr.rel (%p22) target = $region13
    $region12: #{tpu_custom_call.1} parent=1 // pred_region
      %v25 = vlaneseq
      %v26 = vshrl.u32 %v25, 7
      %v27 = vadd.s32 %v26, 8
      %v28 = vlaneseq
      %v29 = vand.u32 %v28, 127
      %v30 = vld [vmem:[#allocation2] sm:$0x1]
      %v31 = vand.u32 2147483647, %v30
      %v32 = vadd.f32 %v31, 0.01
      %vm33 = vcmp.eq.s32.totalorder %v26, %v29
      %vm34 = vcmp.eq.s32.totalorder %v27, %v29
      %v36 = vlaneseq
      %v37 = vshrl.u32 %v36, 7
      %v38 = vsub.s32 0, %v37
      %v39 = vrot.slane %v32, %v38
      %v41 = vsel %vm33, %v39, 0.0
      %v42 = vsel %vm34, %v39, 0.0
      %vm43 = vcmask 130048
      %44 = vst.msk [vmem:[#allocation5] sm:$0xff] %vm43, %v41
      %45 = vst.msk [vmem:[#allocation5 + $0x8] sm:$0xff] %vm43, %v42
    $region13: #{tpu_custom_call.1} parent=1 // pred_fallthru
      _
    %p46 = scmp.ne.s32.totalorder 0, 0
    // Predicated region
    $region14: #{tpu_custom_call.1} parent=1 // pred_check
      %p47 = pneg %p46
    $region15: #{tpu_custom_call.1} parent=1 // pred_check_branch
      %49 = sbr.rel (%p47) target = $region17
    $region16: #{tpu_custom_call.1} parent=1 // pred_region
      %vm50 = vcmask 130048
      %51 = vst.msk [vmem:[#allocation5] sm:$0xff] %vm50, 0.0
      %52 = vst.msk [vmem:[#allocation5 + $0x8] sm:$0xff] %vm50, 0.0
    $region17: #{tpu_custom_call.1} parent=1 // pred_fallthru
      _
    // Predicated region
    $region18: #{tpu_custom_call.1} parent=1 // pred_check
      _
    $region19: #{tpu_custom_call.1} parent=1 // pred_check_branch
      %54 = sbr.rel (0) target = $region21
    $region20: #{tpu_custom_call.1} parent=1 // pred_region
      %s56 = ssub.s32 256, 256
      %57 = vsyncadd [#allocation4], %s56
      %s58 = sshll.u32 [#allocation5], 4
      %s59 = int_to_ptr.vmem [resolvable:$true] %s58
      %64 = dma.vmem_to_hbm [thread:$0]  %s59, 256, %s1, [#allocation4], 128, 128, 8
    $region21: #{tpu_custom_call.1} parent=1 // pred_fallthru
      _
    // Predicated region
    $region22: #{tpu_custom_call.1} parent=1 // pred_check
      _
    $region23: #{tpu_custom_call.1} parent=1 // pred_check_branch
      %66 = sbr.rel (0) target = $region25
    $region24: #{tpu_custom_call.1} parent=1 // pred_region
      %67 = dma.done [#allocation4], 256
    $region25: #{tpu_custom_call.1} parent=1 // pred_fallthru
      _
    %68 = vsyncpa [#allocation3], 1
    %69 = vsyncpa [#allocation4], 1

</llo_original>
